<compile_context>
chip_gen: v7x
topology: tpu7x:2x2x1
jax: 0.10.0
libtpu: 0.0.40
codegen_flags: <defaults>
</compile_context>

<pallas_src>
import jax
import jax.numpy as jnp
from jax.experimental import pallas as pl
from jax.experimental.pallas import tpu as pltpu


def user_encoder_kernel(idx_ref, table_ref, w_ref, b_ref, v1_ref, v2_ref):
    # idx_ref   : (B, 1)   int32  VMEM   user indices (column vector)
    # table_ref : (U, E)   bf16   VMEM   embedding table (single bulk DMA)
    # w_ref     : (E, 2Q)  bf16   VMEM   [W1 | W2] fused
    # b_ref     : (1, 2Q)  f32    VMEM   [b1 | b2] fused
    # v1_ref    : (B, Q)   f32    VMEM   relu(emb @ W1 + b1)
    # v2_ref    : (B, Q)   f32    VMEM   relu(emb @ W2 + b2)
    B = idx_ref.shape[0]
    U = table_ref.shape[0]
    Q = v1_ref.shape[1]

    # Row gather as a one-hot matmul on the MXU (no per-row DMAs, no OOB risk:
    # an out-of-range index selects nothing -> zero embedding row).
    idx = idx_ref[...]                                         # (B, 1) int32
    u_ids = jax.lax.broadcasted_iota(jnp.int32, (B, U), 1)     # (B, U)
    onehot = jnp.where(idx == u_ids, 1.0, 0.0).astype(table_ref.dtype)  # (B, U)
    emb = jnp.dot(onehot, table_ref[...],
                  preferred_element_type=jnp.float32)          # (B, E) f32
    emb = emb.astype(w_ref.dtype)                              # lossless (row select)

    # Fused FC1|FC2: one MXU pass, one bias add, one relu.
    h = jnp.dot(emb, w_ref[...],
                preferred_element_type=jnp.float32) + b_ref[...]   # (B, 2Q) f32
    h = jnp.maximum(h, 0.0)

    v1_ref[...] = h[:, :Q].astype(v1_ref.dtype)
    v2_ref[...] = h[:, Q:].astype(v2_ref.dtype)


def prepare_user_encoder_params(table, w1, b1, w2, b2):
    """One-time parameter prep (hoisted out of the per-call forward path).

    table: (U, E); w1, w2: (E, Q) in x@W layout; b1, b2: (Q,).
    """
    w_fused = jnp.concatenate([w1, w2], axis=1).astype(jnp.bfloat16)     # (E, 2Q)
    b_fused = jnp.concatenate([b1, b2], axis=0).reshape(1, -1).astype(jnp.float32)
    return {
        "table": table.astype(jnp.bfloat16),                              # (U, E)
        "w": w_fused,
        "b": b_fused,
    }


@jax.jit
def user_embedding_encoder(user_index, params):
    """user_index: (B,) int; params: output of prepare_user_encoder_params."""
    table, w, b = params["table"], params["w"], params["b"]
    B = user_index.shape[0]
    Q = w.shape[1] // 2

    idx = user_index.astype(jnp.int32).reshape(B, 1)

    v1, v2 = pl.pallas_call(
        user_encoder_kernel,
        out_shape=(
            jax.ShapeDtypeStruct((B, Q), jnp.float32),
            jax.ShapeDtypeStruct((B, Q), jnp.float32),
        ),
        in_specs=[
            pl.BlockSpec(memory_space=pltpu.MemorySpace.VMEM),   # indices
            pl.BlockSpec(memory_space=pltpu.MemorySpace.VMEM),   # table (bulk DMA)
            pl.BlockSpec(memory_space=pltpu.MemorySpace.VMEM),   # fused weights
            pl.BlockSpec(memory_space=pltpu.MemorySpace.VMEM),   # fused bias
        ],
        out_specs=(
            pl.BlockSpec(memory_space=pltpu.MemorySpace.VMEM),
            pl.BlockSpec(memory_space=pltpu.MemorySpace.VMEM),
        ),
    )(idx, table, w, b)
    return v1, v2


if __name__ == "__main__":
    # Small, module-consistent shapes:
    #   args.user_num = 16, args.embedding_dim = 32, args.query_vector_dim = 32
    #   batch of user indices B = 8
    B, U, E, Q = 8, 16, 32, 32

    key = jax.random.PRNGKey(0)
    k_idx, k_tab, k_w1, k_b1, k_w2, k_b2 = jax.random.split(key, 6)

    user_index = jax.random.randint(k_idx, (B,), 0, U, dtype=jnp.int32)
    table = jax.random.normal(k_tab, (U, E), dtype=jnp.float32)
    w1 = jax.random.normal(k_w1, (E, Q), dtype=jnp.float32) * 0.1
    b1 = jax.random.normal(k_b1, (Q,), dtype=jnp.float32) * 0.1
    w2 = jax.random.normal(k_w2, (E, Q), dtype=jnp.float32) * 0.1
    b2 = jax.random.normal(k_b2, (Q,), dtype=jnp.float32) * 0.1

    params = prepare_user_encoder_params(table, w1, b1, w2, b2)
    v1, v2 = user_embedding_encoder(user_index, params)
    jax.block_until_ready((v1, v2))

    # Reference 1: same (bf16-prepared) params, f32 math -> tight tolerance.
    tab32 = params["table"].astype(jnp.float32)
    w32 = params["w"].astype(jnp.float32)
    b32 = params["b"]
    h_ref = jnp.maximum(tab32[user_index] @ w32 + b32, 0.0)
    r1, r2 = h_ref[:, :Q], h_ref[:, Q:]
    assert jnp.allclose(v1, r1, atol=1e-4, rtol=1e-4)
    assert jnp.allclose(v2, r2, atol=1e-4, rtol=1e-4)

    # Reference 2: original full-f32 PyTorch-equivalent math (bf16 rounding tol).
    emb_f32 = table[user_index]
    f1 = jnp.maximum(emb_f32 @ w1 + b1, 0.0)
    f2 = jnp.maximum(emb_f32 @ w2 + b2, 0.0)
    assert jnp.allclose(v1, f1, atol=3e-2, rtol=3e-2)
    assert jnp.allclose(v2, f2, atol=3e-2, rtol=3e-2)

    print("KERNEL_OK")
</pallas_src>

<mosaic_0001>
module attributes {stable_mosaic.version = 11 : i64} {
  func.func @user_encoder_kernel(%arg0: memref<8x1xi32, #tpu.memory_space<vmem>>, %arg1: memref<16x32xbf16, #tpu.memory_space<vmem>>, %arg2: memref<32x64xbf16, #tpu.memory_space<vmem>>, %arg3: memref<1x64xf32, #tpu.memory_space<vmem>>, %arg4: memref<8x32xf32, #tpu.memory_space<vmem>>, %arg5: memref<8x32xf32, #tpu.memory_space<vmem>>) attributes {dimension_semantics = [], scalar_prefetch = 0 : i64, scratch_operands = 0 : i64, tpu.core_type = #tpu.core_type<tc>} {
    %c0 = arith.constant 0 : index
    %c0_0 = arith.constant 0 : index
    %0 = vector.load %arg0[%c0, %c0_0] : memref<8x1xi32, #tpu.memory_space<vmem>>, vector<8x1xi32>
    %1 = tpu.iota {dimensions = array<i32: 1>} : vector<8x16xi32>
    %2 = vector.broadcast %0 : vector<8x1xi32> to vector<8x16xi32>
    %3 = arith.cmpi eq, %2, %1 : vector<8x16xi32>
    %cst = arith.constant 1.000000e+00 : f32
    %cst_1 = arith.constant 0.000000e+00 : f32
    %4 = vector.broadcast %cst : f32 to vector<8x16xf32>
    %5 = vector.broadcast %cst_1 : f32 to vector<8x16xf32>
    %6 = arith.select %3, %4, %5 : vector<8x16xi1>, vector<8x16xf32>
    %7 = arith.truncf %6 : vector<8x16xf32> to vector<8x16xbf16>
    %c0_2 = arith.constant 0 : index
    %c0_3 = arith.constant 0 : index
    %8 = vector.load %arg1[%c0_2, %c0_3] : memref<16x32xbf16, #tpu.memory_space<vmem>>, vector<16x32xbf16>
    %cst_4 = arith.constant dense<0.000000e+00> : vector<8x32xf32>
    %9 = tpu.matmul %7, %8, %cst_4 {dimension_numbers = #tpu.dot_dimension_numbers<[1], [0], [0], [1], [0, 0, 1, 1], [], []>} : vector<8x16xbf16>, vector<16x32xbf16>, vector<8x32xf32> -> vector<8x32xf32>
    %10 = arith.truncf %9 : vector<8x32xf32> to vector<8x32xbf16>
    %c0_5 = arith.constant 0 : index
    %c0_6 = arith.constant 0 : index
    %11 = vector.load %arg2[%c0_5, %c0_6] : memref<32x64xbf16, #tpu.memory_space<vmem>>, vector<32x64xbf16>
    %cst_7 = arith.constant dense<0.000000e+00> : vector<8x64xf32>
    %12 = tpu.matmul %10, %11, %cst_7 {dimension_numbers = #tpu.dot_dimension_numbers<[1], [0], [0], [1], [0, 0, 1, 1], [], []>} : vector<8x32xbf16>, vector<32x64xbf16>, vector<8x64xf32> -> vector<8x64xf32>
    %c0_8 = arith.constant 0 : index
    %c0_9 = arith.constant 0 : index
    %13 = vector.load %arg3[%c0_8, %c0_9] : memref<1x64xf32, #tpu.memory_space<vmem>>, vector<1x64xf32>
    %14 = vector.broadcast %13 : vector<1x64xf32> to vector<8x64xf32>
    %15 = arith.addf %12, %14 : vector<8x64xf32>
    %cst_10 = arith.constant 0.000000e+00 : f32
    %16 = vector.broadcast %cst_10 : f32 to vector<8x64xf32>
    %17 = arith.maximumf %15, %16 : vector<8x64xf32>
    %18 = vector.extract_strided_slice %17 {offsets = [0, 0], sizes = [8, 32], strides = [1, 1]} : vector<8x64xf32> to vector<8x32xf32>
    %c0_11 = arith.constant 0 : index
    %c0_12 = arith.constant 0 : index
    %19 = vector.load %arg4[%c0_11, %c0_12] : memref<8x32xf32, #tpu.memory_space<vmem>>, vector<8x32xf32>
    tpu.vector_store %arg4[%c0_11, %c0_12], %18 {strides = array<i32>} : memref<8x32xf32, #tpu.memory_space<vmem>>, vector<8x32xf32>,
    %20 = vector.extract_strided_slice %17 {offsets = [0, 32], sizes = [8, 32], strides = [1, 1]} : vector<8x64xf32> to vector<8x32xf32>
    %c0_13 = arith.constant 0 : index
    %c0_14 = arith.constant 0 : index
    %21 = vector.load %arg5[%c0_13, %c0_14] : memref<8x32xf32, #tpu.memory_space<vmem>>, vector<8x32xf32>
    tpu.vector_store %arg5[%c0_13, %c0_14], %20 {strides = array<i32>} : memref<8x32xf32, #tpu.memory_space<vmem>>, vector<8x32xf32>,
    return
  }
}

</mosaic_0001>

<llo_original>
// kernel: user_embedding_encoder.1
$region0: #{user_embedding_encoder.1}
  #allocation0 [shape = 'u32[]', space=smem, size = 0x4, offset = 0x4, fixed_abs, tag = 'smem constant byte address 0x4 - core index']
  #allocation1 [shape = 'u32[144,128]{1,0:T(1,128)}', space=vmem, size = 0x12000, scoped, tag = 'internal scratch']
  %s0 = inlined_call_operand.vmem [shape: s32[8,1], index: 0, kind: input, shape index: {}]
  %s1 = inlined_call_operand.vmem [shape: bf16[16,32], index: 1, kind: input, shape index: {}]
  %s2 = inlined_call_operand.vmem [shape: bf16[32,64], index: 2, kind: input, shape index: {}]
  %s3 = inlined_call_operand.hbm [shape: f32[1,64], index: 3, kind: input, shape index: {}]
  %s4 = inlined_call_operand.hbm [shape: f32[8,32], index: 4, kind: output, shape index: {0}]
  %s5 = inlined_call_operand.hbm [shape: f32[8,32], index: 5, kind: output, shape index: {1}]
  %6 = xla_tuple %s4, %s5
  %s7 = sld [smem:[#allocation0]]
  $region38: #{user_embedding_encoder.1} parent=0
    _
  %s9 = ssub.s32 1, %s7
  %s10 = scalar_select 0, %s9, %s7
  $region1: #{user_embedding_encoder.1} parent=0
    #allocation2 [shape = 'u8[512]{0}', space=vmem, size = 0x400, scoped, tag = 'input window, operand 3, single buffered']
    #allocation3 [shape = 's32[1]{0}', space=sflag, size = 0x4, scoped, tag = 'scoped memory for user_embedding_encoder.1']
    #allocation4 [shape = 's32[1]{0}', space=sflag, size = 0x4, scoped, tag = 'scoped memory for user_embedding_encoder.1']
    #allocation5 [shape = 'u8[4096]{0}', space=vmem, size = 0x1000, scoped, tag = 'output window, operand 0, single buffered']
    #allocation6 [shape = 'u8[4096]{0}', space=vmem, size = 0x1000, scoped, tag = 'output window, operand 1, single buffered']
    #allocation7 [shape = 's32[1]{0}', space=sflag, size = 0x4, scoped, tag = 'scoped memory for user_embedding_encoder.1']
    %11 = vsyncpa [#allocation3], 0
    %12 = vsyncpa [#allocation4], 0
    %13 = vsyncpa [#allocation7], 0
    // Predicated region
    $region2: #{user_embedding_encoder.1} parent=1 // pred_check
      _
    $region3: #{user_embedding_encoder.1} parent=1 // pred_check_branch
      %15 = sbr.rel (0) target = $region5
    $region4: #{user_embedding_encoder.1} parent=1 // pred_region
      _
    $region5: #{user_embedding_encoder.1} parent=1 // pred_fallthru
      _
    // Predicated region
    $region6: #{user_embedding_encoder.1} parent=1 // pred_check
      _
    $region7: #{user_embedding_encoder.1} parent=1 // pred_check_branch
      %17 = sbr.rel (0) target = $region9
    $region8: #{user_embedding_encoder.1} parent=1 // pred_region
      _
    $region9: #{user_embedding_encoder.1} parent=1 // pred_fallthru
      _
    // Predicated region
    $region10: #{user_embedding_encoder.1} parent=1 // pred_check
      _
    $region11: #{user_embedding_encoder.1} parent=1 // pred_check_branch
      %19 = sbr.rel (0) target = $region13
    $region12: #{user_embedding_encoder.1} parent=1 // pred_region
      _
    $region13: #{user_embedding_encoder.1} parent=1 // pred_fallthru
      _
    // Predicated region
    $region14: #{user_embedding_encoder.1} parent=1 // pred_check
      _
    $region15: #{user_embedding_encoder.1} parent=1 // pred_check_branch
      %21 = sbr.rel (0) target = $region17
    $region16: #{user_embedding_encoder.1} parent=1 // pred_region
      %s23 = ssub.s32 16, 16
      %24 = vsyncadd [#allocation3], %s23
      %s26 = sshll.u32 [#allocation2], 4
      %s27 = int_to_ptr.vmem [resolvable:$true] %s26
      %29 = dma.hbm_to_vmem [thread:$0]  %s3, 16, %s27, [#allocation3]
    $region17: #{user_embedding_encoder.1} parent=1 // pred_fallthru
      _
    // Predicated region
    $region18: #{user_embedding_encoder.1} parent=1 // pred_check
      _
    $region19: #{user_embedding_encoder.1} parent=1 // pred_check_branch
      %31 = sbr.rel (0) target = $region21
    $region20: #{user_embedding_encoder.1} parent=1 // pred_region
      %32 = dma.done [#allocation3], 16
    $region21: #{user_embedding_encoder.1} parent=1 // pred_fallthru
      _
    %v34 = vld [vmem:[%s0] sm:$0xff]
    %v35 = vlaneseq
    %v36 = vand.u32 %v35, 127
    %37 = vset.pattern.permute.xlu0 0
    %38 = vperm.xlu0 %37, %v34
    %v39 = vpop.permute.xlu0 %38
    %vm40 = vcmp.eq.s32.totalorder %v39, %v36
    %v41 = vsel %vm40, 1.0, 0.0
    %v42 = vpack.c.bf16 %v41, %v41
    %v43 = vld [vmem:[%s1] sm:$0xf]
    %v44 = vld [vmem:[%s1 + $0x4] sm:$0xf]
    %v47 = vunpack.c.l.b16 %v43
    %v48 = vunpack.c.l.b16 %v44
    %v49 = vpack.c.b16 %v48, %v47
    %vm51 = vcmask 130048
    %v53 = vsel %vm51, %v42, 0
    %55 = vmatprep.subr.bf16.mxu0 0
    %56 = vmatpush1.bf16.msra.mxu0 %v49
    %57 = vmatprep.subr.bf16.mxu0 0
    %58 = vmatpush1.bf16.msra.mxu0 0
    %59 = vmatprep.subr.bf16.mxu0 0
    %60 = vmatpush1.bf16.msra.mxu0 0
    %61 = vmatprep.subr.bf16.mxu0 0
    %62 = vmatpush1.bf16.msra.mxu0 0
    %63 = vmatprep.subr.bf16.mxu0 0
    %64 = vmatpush1.bf16.msra.mxu0 0
    %65 = vmatprep.subr.bf16.mxu0 0
    %66 = vmatpush1.bf16.msra.mxu0 0
    %67 = vmatprep.subr.bf16.mxu0 0
    %68 = vmatpush1.bf16.msra.mxu0 0
    %69 = vmatprep.subr.bf16.mxu0 0
    %70 = vmatpush1.bf16.msra.mxu0 0
    %71 = vmatprep.subr.bf16.mxu0 0
    %72 = vmatpush1.bf16.msra.mxu0 0
    %73 = vmatprep.subr.bf16.mxu0 0
    %74 = vmatpush1.bf16.msra.mxu0 0
    %75 = vmatprep.subr.bf16.mxu0 0
    %76 = vmatpush1.bf16.msra.mxu0 0
    %77 = vmatprep.subr.bf16.mxu0 0
    %78 = vmatpush1.bf16.msra.mxu0 0
    %79 = vmatprep.subr.bf16.mxu0 0
    %80 = vmatpush1.bf16.msra.mxu0 0
    %81 = vmatprep.subr.bf16.mxu0 0
    %82 = vmatpush1.bf16.msra.mxu0 0
    %83 = vmatprep.subr.bf16.mxu0 0
    %84 = vmatpush1.bf16.msra.mxu0 0
    %85 = vmatprep.subr.bf16.mxu0 0
    %86 = vmatpush1.bf16.msra.mxu0 0
    %87 = vmatprep.mubr.bf16.mxu0 0
    %88 = vmatmul.mubr.bf16.gmra.mrb[0].mxu0 %v53
    %v89 = vpop.f32.mrb[0].mxu0
    %v90 = vadd.f32 0.0, %v89
    %v91 = vpop.f32.mrb[0].mxu0
    %v92 = vpop.f32.mrb[0].mxu0
    %v93 = vpop.f32.mrb[0].mxu0
    %94 = vdwg.mxu0
    %v95 = vpack.c.bf16 %v90, %v90
    %v96 = vld [vmem:[%s2] sm:$0xf]
    %v97 = vld [vmem:[%s2 + $0x4] sm:$0xf]
    %v98 = vld [vmem:[%s2 + $0x8] sm:$0xf]
    %v99 = vld [vmem:[%s2 + $0xc] sm:$0xf]
    %v100 = vld [vmem:[#allocation2] sm:$0x1]
    %v102 = vlaneseq
    %v103 = vshrl.u32 %v102, 7
    %v104 = vsub.s32 0, %v103
    %v105 = vrot.slane %v100, %v104
    %v111 = vunpack.c.l.b16 %v96
    %v112 = vunpack.c.l.b16 %v97
    %v113 = vunpack.c.l.b16 %v98
    %v114 = vunpack.c.l.b16 %v99
    %v115 = vpack.c.b16 %v112, %v111
    %v116 = vpack.c.b16 %v114, %v113
    %vm119 = vcmask 261120
    %v121 = vsel %vm119, %v95, 0
    %123 = vmatprep.subr.bf16.mxu0 0
    %124 = vmatpush1.bf16.msra.mxu0 %v115
    %125 = vmatprep.subr.bf16.mxu0 0
    %126 = vmatpush1.bf16.msra.mxu0 %v116
    %127 = vmatprep.subr.bf16.mxu0 0
    %128 = vmatpush1.bf16.msra.mxu0 0
    %129 = vmatprep.subr.bf16.mxu0 0
    %130 = vmatpush1.bf16.msra.mxu0 0
    %131 = vmatprep.subr.bf16.mxu0 0
    %132 = vmatpush1.bf16.msra.mxu0 0
    %133 = vmatprep.subr.bf16.mxu0 0
    %134 = vmatpush1.bf16.msra.mxu0 0
    %135 = vmatprep.subr.bf16.mxu0 0
    %136 = vmatpush1.bf16.msra.mxu0 0
    %137 = vmatprep.subr.bf16.mxu0 0
    %138 = vmatpush1.bf16.msra.mxu0 0
    %139 = vmatprep.subr.bf16.mxu0 0
    %140 = vmatpush1.bf16.msra.mxu0 0
    %141 = vmatprep.subr.bf16.mxu0 0
    %142 = vmatpush1.bf16.msra.mxu0 0
    %143 = vmatprep.subr.bf16.mxu0 0
    %144 = vmatpush1.bf16.msra.mxu0 0
    %145 = vmatprep.subr.bf16.mxu0 0
    %146 = vmatpush1.bf16.msra.mxu0 0
    %147 = vmatprep.subr.bf16.mxu0 0
    %148 = vmatpush1.bf16.msra.mxu0 0
    %149 = vmatprep.subr.bf16.mxu0 0
    %150 = vmatpush1.bf16.msra.mxu0 0
    %151 = vmatprep.subr.bf16.mxu0 0
    %152 = vmatpush1.bf16.msra.mxu0 0
    %153 = vmatprep.subr.bf16.mxu0 0
    %154 = vmatpush1.bf16.msra.mxu0 0
    %155 = vmatprep.mubr.bf16.mxu0 0
    %156 = vmatmul.mubr.bf16.gmra.mrb[0].mxu0 %v121
    %v157 = vpop.f32.mrb[0].mxu0
    %v158 = vadd.f32 %v105, %v157
    %v159 = vpop.f32.mrb[0].mxu0
    %v160 = vpop.f32.mrb[0].mxu0
    %v161 = vpop.f32.mrb[0].mxu0
    %162 = vdwg.mxu0
    %v163 = vmax.f32 %v158, 0.0
    %164 = vst.msk [vmem:[#allocation5] sm:$0xff] %vm119, %v163
    %166 = vrot.lane.b32.xlu0 %v163, 96
    %v167 = vpop.permute.xlu0 %166
    %169 = vst.msk [vmem:[#allocation6] sm:$0xff] %vm119, %v167
    // Predicated region
    $region22: #{user_embedding_encoder.1} parent=1 // pred_check
      _
    $region23: #{user_embedding_encoder.1} parent=1 // pred_check_branch
      %171 = sbr.rel (0) target = $region25
    $region24: #{user_embedding_encoder.1} parent=1 // pred_region
      %s173 = ssub.s32 128, 128
      %174 = vsyncadd [#allocation4], %s173
      %s176 = sshll.u32 [#allocation5], 4
      %s177 = int_to_ptr.vmem [resolvable:$true] %s176
      %179 = dma.vmem_to_hbm [thread:$0]  %s177, 128, %s4, [#allocation4]
    $region25: #{user_embedding_encoder.1} parent=1 // pred_fallthru
      _
    // Predicated region
    $region26: #{user_embedding_encoder.1} parent=1 // pred_check
      _
    $region27: #{user_embedding_encoder.1} parent=1 // pred_check_branch
      %181 = sbr.rel (0) target = $region29
    $region28: #{user_embedding_encoder.1} parent=1 // pred_region
      %s183 = ssub.s32 128, 128
      %184 = vsyncadd [#allocation7], %s183
      %s186 = sshll.u32 [#allocation6], 4
      %s187 = int_to_ptr.vmem [resolvable:$true] %s186
      %189 = dma.vmem_to_hbm [thread:$0]  %s187, 128, %s5, [#allocation7]
    $region29: #{user_embedding_encoder.1} parent=1 // pred_fallthru
      _
    // Predicated region
    $region30: #{user_embedding_encoder.1} parent=1 // pred_check
      _
    $region31: #{user_embedding_encoder.1} parent=1 // pred_check_branch
      %191 = sbr.rel (0) target = $region33
    $region32: #{user_embedding_encoder.1} parent=1 // pred_region
      %192 = dma.done [#allocation4], 128
    $region33: #{user_embedding_encoder.1} parent=1 // pred_fallthru
      _
    // Predicated region
    $region34: #{user_embedding_encoder.1} parent=1 // pred_check
      _
    $region35: #{user_embedding_encoder.1} parent=1 // pred_check_branch
      %194 = sbr.rel (0) target = $region37
    $region36: #{user_embedding_encoder.1} parent=1 // pred_region
      %195 = dma.done [#allocation7], 128
    $region37: #{user_embedding_encoder.1} parent=1 // pred_fallthru
      _
    %196 = vsyncpa [#allocation3], 1
    %197 = vsyncpa [#allocation4], 1
    %198 = vsyncpa [#allocation7], 1

</llo_original>
